<compile_context>
chip_gen: v7x
topology: tpu7x:2x2x1
jax: 0.10.0
libtpu: 0.0.40
codegen_flags: <defaults>
</compile_context>

<pallas_src>
import functools

import jax
import jax.numpy as jnp
from jax.experimental import pallas as pl
from jax.experimental.pallas import tpu as pltpu


HIDDEN = 128


def _round_up(x, m):
    return ((x + m - 1) // m) * m


def critic_kernel(s_ref, a_ref, w1s_ref, w1a_ref, b1_ref, w2_ref, b2_ref,
                  w3_ref, b3_ref, o_ref):
    # s_ref:  (TB, S)      a_ref:  (TB, A)
    # w1s_ref:(S, 128)     w1a_ref:(A, 128)   b1_ref:(1, 128)
    # w2_ref: (128, 128)   b2_ref: (1, 128)
    # w3_ref: (1, 128)     b3_ref: (1,) in SMEM
    # o_ref:  (TB, 1)
    # Layer 1: split matmul == matmul on concat([state, action]) (MXU, f32 acc).
    h1 = (jnp.dot(s_ref[...], w1s_ref[...], preferred_element_type=jnp.float32)
          + jnp.dot(a_ref[...], w1a_ref[...], preferred_element_type=jnp.float32)
          + b1_ref[...])
    h1 = jnp.maximum(h1, 0.0)                                   # f32 VPU
    # Layer 2 (MXU, f32 acc). Cast keeps bf16 MXU path when weights are bf16.
    h2 = jnp.dot(h1.astype(w2_ref.dtype), w2_ref[...],
                 preferred_element_type=jnp.float32) + b2_ref[...]
    h2 = jnp.maximum(h2, 0.0)                                   # f32 VPU
    # Layer 3: out_features == 1 -> VPU multiply + lane reduction (skip MXU).
    y = jnp.sum(h2 * w3_ref[...], axis=-1, keepdims=True) + b3_ref[0]
    o_ref[...] = y.astype(o_ref.dtype)


def prepare_critic_params(params, state_size, compute_dtype=jnp.float32):
    """One-time repack: transpose + split layer-1 weights; keep biases/w3 in f32."""
    w1, b1, w2, b2, w3, b3 = params
    w1s = jnp.asarray(w1[:, :state_size].T, compute_dtype)      # (S, 128)
    w1a = jnp.asarray(w1[:, state_size:].T, compute_dtype)      # (A, 128)
    w2t = jnp.asarray(w2.T, compute_dtype)                      # (128, 128)
    b1r = jnp.asarray(b1, jnp.float32).reshape(1, -1)           # (1, 128)
    b2r = jnp.asarray(b2, jnp.float32).reshape(1, -1)           # (1, 128)
    w3r = jnp.asarray(w3, jnp.float32).reshape(1, -1)           # (1, 128)
    b3r = jnp.asarray(b3, jnp.float32).reshape(1)               # (1,) -> SMEM scalar
    return (w1s, w1a, b1r, w2t, b2r, w3r, b3r)


def critic_forward(state, action, prepared, *, tile_b=256):
    """Pallas implementation of Critic.forward(state, action)."""
    w1s, w1a, b1r, w2t, b2r, w3r, b3r = prepared
    B, S = state.shape
    A = action.shape[-1]
    H = w2t.shape[0]
    compute_dtype = w1s.dtype
    out_dtype = state.dtype

    # Clamp the tile to the (8-aligned) batch and pad B up to a tile multiple.
    tile_b = max(8, min(tile_b, _round_up(B, 8)))
    b_pad = _round_up(B, tile_b)

    s = state.astype(compute_dtype)
    a = action.astype(compute_dtype)
    if b_pad != B:
        s = jnp.pad(s, ((0, b_pad - B), (0, 0)))
        a = jnp.pad(a, ((0, b_pad - B), (0, 0)))

    grid = (b_pad // tile_b,)
    isz = jnp.dtype(compute_dtype).itemsize
    cost = pl.CostEstimate(
        flops=2 * b_pad * (S * H + A * H + H * H + H),
        transcendentals=0,
        bytes_accessed=(b_pad * (S + A) * isz            # activations in
                        + (S + A + H) * H * isz          # w1s, w1a, w2
                        + (3 * H + 1) * 4                # b1, b2, w3, b3
                        + b_pad * 4),                    # output
    )

    out = pl.pallas_call(
        critic_kernel,
        out_shape=jax.ShapeDtypeStruct((b_pad, 1), out_dtype),
        grid_spec=pltpu.PrefetchScalarGridSpec(
            num_scalar_prefetch=0,
            grid=grid,
            in_specs=[
                pl.BlockSpec((tile_b, S), lambda i: (i, 0)),   # state tile
                pl.BlockSpec((tile_b, A), lambda i: (i, 0)),   # action tile
                pl.BlockSpec((S, H), lambda i: (0, 0)),        # w1 (state part)
                pl.BlockSpec((A, H), lambda i: (0, 0)),        # w1 (action part)
                pl.BlockSpec((1, H), lambda i: (0, 0)),        # b1
                pl.BlockSpec((H, H), lambda i: (0, 0)),        # w2
                pl.BlockSpec((1, H), lambda i: (0, 0)),        # b2
                pl.BlockSpec((1, H), lambda i: (0, 0)),        # w3 row
                pl.BlockSpec(memory_space=pltpu.MemorySpace.SMEM),  # b3 scalar
            ],
            out_specs=pl.BlockSpec((tile_b, 1), lambda i: (i, 0)),
        ),
        compiler_params=pltpu.CompilerParams(
            dimension_semantics=("parallel",)),
        cost_estimate=cost,
    )(s, a, w1s, w1a, b1r, w2t, b2r, w3r, b3r)

    return out[:B]


def init_critic_params(key, state_size, action_size, hidden=HIDDEN,
                       dtype=jnp.float32):
    """Deterministic init mimicking PyTorch nn.Linear default (uniform +-1/sqrt(fan_in))."""
    def linear(k, fan_in, fan_out):
        kw, kb = jax.random.split(k)
        bound = 1.0 / jnp.sqrt(fan_in)
        w = jax.random.uniform(kw, (fan_out, fan_in), dtype, -bound, bound)
        b = jax.random.uniform(kb, (fan_out,), dtype, -bound, bound)
        return w, b

    k1, k2, k3 = jax.random.split(key, 3)
    w1, b1 = linear(k1, state_size + action_size, hidden)
    w2, b2 = linear(k2, hidden, hidden)
    w3, b3 = linear(k3, hidden, 1)
    return (w1, b1, w2, b2, w3, b3)


def critic_forward_ref(state, action, params):
    """Plain-JAX reference (matches PyTorch semantics)."""
    w1, b1, w2, b2, w3, b3 = params
    x = jnp.concatenate([state, action], axis=-1)
    x = jnp.maximum(x @ w1.T + b1, 0.0)
    x = jnp.maximum(x @ w2.T + b2, 0.0)
    return x @ w3.T + b3


if __name__ == "__main__":
    key = jax.random.PRNGKey(0)
    k_params, k_state, k_action = jax.random.split(key, 3)

    batch = 200          # deliberately NOT a multiple of the tile -> exercises padding
    state_size = 16
    action_size = 8

    params = init_critic_params(k_params, state_size, action_size)
    state = jax.random.normal(k_state, (batch, state_size), jnp.float32)
    action = jax.random.normal(k_action, (batch, action_size), jnp.float32)

    # One-time weight repack (transpose/split) -- not repeated per forward call.
    prepared = prepare_critic_params(params, state_size, compute_dtype=jnp.float32)

    fwd = jax.jit(functools.partial(critic_forward, tile_b=128))
    out = jax.block_until_ready(fwd(state, action, prepared))

    ref = critic_forward_ref(state, action, params)
    assert out.shape == (batch, 1), out.shape
    assert jnp.allclose(out, ref, atol=1e-5, rtol=1e-5), "mismatch vs reference"

    print("KERNEL_OK")
</pallas_src>

<mosaic_0001>
module attributes {stable_mosaic.version = 11 : i64} {
  func.func @critic_kernel(%arg0: i32, %arg1: memref<128x16xf32, #tpu.memory_space<vmem>>, %arg2: memref<128x8xf32, #tpu.memory_space<vmem>>, %arg3: memref<16x128xf32, #tpu.memory_space<vmem>>, %arg4: memref<8x128xf32, #tpu.memory_space<vmem>>, %arg5: memref<1x128xf32, #tpu.memory_space<vmem>>, %arg6: memref<128x128xf32, #tpu.memory_space<vmem>>, %arg7: memref<1x128xf32, #tpu.memory_space<vmem>>, %arg8: memref<1x128xf32, #tpu.memory_space<vmem>>, %arg9: memref<1xf32, #tpu.memory_space<smem>>, %arg10: memref<128x1xf32, #tpu.memory_space<vmem>>) attributes {dimension_semantics = [#tpu.dimension_semantics<parallel>], iteration_bounds = array<i64: 2>, scalar_prefetch = 0 : i64, scratch_operands = 0 : i64, tpu.core_type = #tpu.core_type<tc>, window_params = [{transform_indices = @transform_0, window_bounds = array<i64: 128, 16>}, {transform_indices = @transform_1, window_bounds = array<i64: 128, 8>}, {pipeline_mode = #tpu.pipeline_mode<synchronous>, transform_indices = @transform_2, window_bounds = array<i64: 16, 128>}, {pipeline_mode = #tpu.pipeline_mode<synchronous>, transform_indices = @transform_3, window_bounds = array<i64: 8, 128>}, {pipeline_mode = #tpu.pipeline_mode<synchronous>, transform_indices = @transform_4, window_bounds = array<i64: 1, 128>}, {pipeline_mode = #tpu.pipeline_mode<synchronous>, transform_indices = @transform_5, window_bounds = array<i64: 128, 128>}, {pipeline_mode = #tpu.pipeline_mode<synchronous>, transform_indices = @transform_6, window_bounds = array<i64: 1, 128>}, {pipeline_mode = #tpu.pipeline_mode<synchronous>, transform_indices = @transform_7, window_bounds = array<i64: 1, 128>}, {transform_indices = @transform_8, window_bounds = array<i64: 1>}, {transform_indices = @transform_9, window_bounds = array<i64: 128, 1>}]} {
    %c0 = arith.constant 0 : index
    %c0_0 = arith.constant 0 : index
    %0 = vector.load %arg1[%c0, %c0_0] : memref<128x16xf32, #tpu.memory_space<vmem>>, vector<128x16xf32>
    %c0_1 = arith.constant 0 : index
    %c0_2 = arith.constant 0 : index
    %1 = vector.load %arg3[%c0_1, %c0_2] : memref<16x128xf32, #tpu.memory_space<vmem>>, vector<16x128xf32>
    %cst = arith.constant dense<0.000000e+00> : vector<128x128xf32>
    %2 = tpu.matmul %0, %1, %cst {dimension_numbers = #tpu.dot_dimension_numbers<[1], [0], [0], [1], [0, 0, 1, 1], [], []>} : vector<128x16xf32>, vector<16x128xf32>, vector<128x128xf32> -> vector<128x128xf32>
    %c0_3 = arith.constant 0 : index
    %c0_4 = arith.constant 0 : index
    %3 = vector.load %arg2[%c0_3, %c0_4] : memref<128x8xf32, #tpu.memory_space<vmem>>, vector<128x8xf32>
    %c0_5 = arith.constant 0 : index
    %c0_6 = arith.constant 0 : index
    %4 = vector.load %arg4[%c0_5, %c0_6] : memref<8x128xf32, #tpu.memory_space<vmem>>, vector<8x128xf32>
    %cst_7 = arith.constant dense<0.000000e+00> : vector<128x128xf32>
    %5 = tpu.matmul %3, %4, %cst_7 {dimension_numbers = #tpu.dot_dimension_numbers<[1], [0], [0], [1], [0, 0, 1, 1], [], []>} : vector<128x8xf32>, vector<8x128xf32>, vector<128x128xf32> -> vector<128x128xf32>
    %6 = arith.addf %2, %5 : vector<128x128xf32>
    %c0_8 = arith.constant 0 : index
    %c0_9 = arith.constant 0 : index
    %7 = vector.load %arg5[%c0_8, %c0_9] : memref<1x128xf32, #tpu.memory_space<vmem>>, vector<1x128xf32>
    %8 = vector.broadcast %7 : vector<1x128xf32> to vector<128x128xf32>
    %9 = arith.addf %6, %8 : vector<128x128xf32>
    %cst_10 = arith.constant 0.000000e+00 : f32
    %10 = vector.broadcast %cst_10 : f32 to vector<128x128xf32>
    %11 = arith.maximumf %9, %10 : vector<128x128xf32>
    %c0_11 = arith.constant 0 : index
    %c0_12 = arith.constant 0 : index
    %12 = vector.load %arg6[%c0_11, %c0_12] : memref<128x128xf32, #tpu.memory_space<vmem>>, vector<128x128xf32>
    %cst_13 = arith.constant dense<0.000000e+00> : vector<128x128xf32>
    %13 = tpu.matmul %11, %12, %cst_13 {dimension_numbers = #tpu.dot_dimension_numbers<[1], [0], [0], [1], [0, 0, 1, 1], [], []>} : vector<128x128xf32>, vector<128x128xf32>, vector<128x128xf32> -> vector<128x128xf32>
    %c0_14 = arith.constant 0 : index
    %c0_15 = arith.constant 0 : index
    %14 = vector.load %arg7[%c0_14, %c0_15] : memref<1x128xf32, #tpu.memory_space<vmem>>, vector<1x128xf32>
    %15 = vector.broadcast %14 : vector<1x128xf32> to vector<128x128xf32>
    %16 = arith.addf %13, %15 : vector<128x128xf32>
    %cst_16 = arith.constant 0.000000e+00 : f32
    %17 = vector.broadcast %cst_16 : f32 to vector<128x128xf32>
    %18 = arith.maximumf %16, %17 : vector<128x128xf32>
    %c0_17 = arith.constant 0 : index
    %c0_18 = arith.constant 0 : index
    %19 = vector.load %arg8[%c0_17, %c0_18] : memref<1x128xf32, #tpu.memory_space<vmem>>, vector<1x128xf32>
    %20 = vector.broadcast %19 : vector<1x128xf32> to vector<128x128xf32>
    %21 = arith.mulf %18, %20 : vector<128x128xf32>
    %cst_19 = arith.constant dense<0.000000e+00> : vector<128xf32>
    %22 = vector.multi_reduction <add>, %21, %cst_19 [1] : vector<128x128xf32> to vector<128xf32>
    %23 = vector.shape_cast %22 : vector<128xf32> to vector<128x1xf32>
    %c0_20 = arith.constant 0 : index
    %24 = memref.load %arg9[%c0_20] : memref<1xf32, #tpu.memory_space<smem>>
    %25 = vector.broadcast %24 : f32 to vector<128x1xf32>
    %26 = arith.addf %23, %25 : vector<128x1xf32>
    %c0_21 = arith.constant 0 : index
    %c0_22 = arith.constant 0 : index
    %27 = vector.load %arg10[%c0_21, %c0_22] : memref<128x1xf32, #tpu.memory_space<vmem>>, vector<128x1xf32>
    tpu.vector_store %arg10[%c0_21, %c0_22], %26 {strides = array<i32>} : memref<128x1xf32, #tpu.memory_space<vmem>>, vector<128x1xf32>,
    return
  }
  func.func @transform_0(%arg0: i32) -> (i32, i32) {
    %c0_i32 = arith.constant 0 : i32
    %c0_i32_0 = arith.constant 0 : i32
    return %arg0, %c0_i32 : i32, i32
  }
  func.func @transform_1(%arg0: i32) -> (i32, i32) {
    %c0_i32 = arith.constant 0 : i32
    %c0_i32_0 = arith.constant 0 : i32
    return %arg0, %c0_i32 : i32, i32
  }
  func.func @transform_2(%arg0: i32) -> (i32, i32) {
    %c0_i32 = arith.constant 0 : i32
    %c0_i32_0 = arith.constant 0 : i32
    %c0_i32_1 = arith.constant 0 : i32
    return %c0_i32, %c0_i32_0 : i32, i32
  }
  func.func @transform_3(%arg0: i32) -> (i32, i32) {
    %c0_i32 = arith.constant 0 : i32
    %c0_i32_0 = arith.constant 0 : i32
    %c0_i32_1 = arith.constant 0 : i32
    return %c0_i32, %c0_i32_0 : i32, i32
  }
  func.func @transform_4(%arg0: i32) -> (i32, i32) {
    %c0_i32 = arith.constant 0 : i32
    %c0_i32_0 = arith.constant 0 : i32
    %c0_i32_1 = arith.constant 0 : i32
    return %c0_i32, %c0_i32_0 : i32, i32
  }
  func.func @transform_5(%arg0: i32) -> (i32, i32) {
    %c0_i32 = arith.constant 0 : i32
    %c0_i32_0 = arith.constant 0 : i32
    %c0_i32_1 = arith.constant 0 : i32
    return %c0_i32, %c0_i32_0 : i32, i32
  }
  func.func @transform_6(%arg0: i32) -> (i32, i32) {
    %c0_i32 = arith.constant 0 : i32
    %c0_i32_0 = arith.constant 0 : i32
    %c0_i32_1 = arith.constant 0 : i32
    return %c0_i32, %c0_i32_0 : i32, i32
  }
  func.func @transform_7(%arg0: i32) -> (i32, i32) {
    %c0_i32 = arith.constant 0 : i32
    %c0_i32_0 = arith.constant 0 : i32
    %c0_i32_1 = arith.constant 0 : i32
    return %c0_i32, %c0_i32_0 : i32, i32
  }
  func.func @transform_8(%arg0: i32) -> i32 {
    %c0_i32 = arith.constant 0 : i32
    %c0_i32_0 = arith.constant 0 : i32
    return %c0_i32 : i32
  }
  func.func @transform_9(%arg0: i32) -> (i32, i32) {
    %c0_i32 = arith.constant 0 : i32
    %c0_i32_0 = arith.constant 0 : i32
    return %arg0, %c0_i32 : i32, i32
  }
}

</mosaic_0001>

<llo_original>
// kernel: critic_forward.1
$region0: #{critic_forward.1}
  #allocation0 [shape = 'u32[]', space=smem, size = 0x4, offset = 0x4, fixed_abs, tag = 'smem constant byte address 0x4 - core index']
  #allocation1 [shape = 'u32[144,128]{1,0:T(1,128)}', space=vmem, size = 0x12000, scoped, tag = 'internal scratch']
  #allocation2 [shape = 'f32[1]{0:T(128)S(6)}', space=smem, size = 0x200, scoped, tag = 'scoped memory for critic_forward.1']
  %s0 = inlined_call_operand.vmem [shape: f32[256,16], index: 0, kind: input, shape index: {}]
  %s1 = inlined_call_operand.vmem [shape: f32[256,8], index: 1, kind: input, shape index: {}]
  %s2 = inlined_call_operand.vmem [shape: f32[16,128], index: 2, kind: input, shape index: {}]
  %s3 = inlined_call_operand.vmem [shape: f32[8,128], index: 3, kind: input, shape index: {}]
  %s4 = inlined_call_operand.vmem [shape: f32[1,128], index: 4, kind: input, shape index: {}]
  %s5 = inlined_call_operand.vmem [shape: f32[128,128], index: 5, kind: input, shape index: {}]
  %s6 = inlined_call_operand.vmem [shape: f32[1,128], index: 6, kind: input, shape index: {}]
  %s7 = inlined_call_operand.vmem [shape: f32[1,128], index: 7, kind: input, shape index: {}]
  %s8 = inlined_call_operand.<no memory space> [shape: f32[1], index: 8, kind: input, shape index: {}]
  %s9 = inlined_call_operand.vmem [shape: f32[256,1], index: 9, kind: output, shape index: {}]
  %s10 = sld [smem:[#allocation0]]
  $region69: #{critic_forward.1} parent=0
    _
  %s12 = ssub.s32 1, %s10
  %s13 = scalar_select 0, %s12, %s10
  %14 = sst [smem:[#allocation2]] %s8
  loop: start=0, step=1, limit=4
  $region2: #{critic_forward.1} parent=0 // loop_pre_header
    _
  $region3: #{critic_forward.1} parent=0 // loop_header
    %s16 = sphi 0, %s20
    %p17 = scmp.ge.s32.totalorder %s16, 4
    %s26 = sphi 0, %s28
    %s29 = sphi 0, %s26
    %s30 = sphi 0, %s29
    %s46 = sphi 0, %s30
    %s52 = sphi 0, %s54
    %s55 = sphi 0, %s52
    %s56 = sphi 0, %s55
    %s72 = sphi 0, %s56
    %s76 = sphi 0, %s76
    %s78 = sphi 0, %s76
    %s79 = sphi 0, %s78
    %s93 = sphi 0, %s79
    %s97 = sphi 0, %s97
    %s99 = sphi 0, %s97
    %s100 = sphi 0, %s99
    %s114 = sphi 0, %s100
    %s118 = sphi 0, %s118
    %s120 = sphi 0, %s118
    %s121 = sphi 0, %s120
    %s135 = sphi 0, %s121
    %s139 = sphi 0, %s139
    %s141 = sphi 0, %s139
    %s142 = sphi 0, %s141
    %s156 = sphi 0, %s142
    %s160 = sphi 0, %s160
    %s162 = sphi 0, %s160
    %s163 = sphi 0, %s162
    %s177 = sphi 0, %s163
    %s181 = sphi 0, %s181
    %s183 = sphi 0, %s181
    %s184 = sphi 0, %s183
    %s198 = sphi 0, %s184
    %s202 = sphi 0, %s202
    %s204 = sphi 0, %s202
    %s205 = sphi 0, %s204
    %s219 = sphi 0, %s205
    %s225 = sphi 0, %s227
    %s228 = sphi 0, %s225
    %s229 = sphi 0, %s228
    %s245 = sphi 0, %s229
  $region4: #{critic_forward.1} parent=0 // loop_header_branch
    %19 = sbr.rel (%p17) target = $region8
  $region5: #{critic_forward.1} parent=0 // loop_body
    %s21 = ssub.s32 %s16, 1
    %s22 = ssub.s32 %s16, 2
    %s23 = sadd.s32 %s16, 1
    %s24 = ssub.s32 %s16, %s23
    %p25 = scmp.eq.s32.totalorder %s24, 0
    %s27 = sadd.s32 %s26, 1
    %s28 = scalar_select %p25, %s26, %s27
    %p31 = pneg %p25
    %p32 = scmp.eq.s32.totalorder %s16, 1
    %p33 = por %p31, %p32
    %p34 = scmp.ne.s32.totalorder %s26, %s29
    %p35 = scmp.eq.s32.totalorder %s16, 0
    %p36 = por %p34, %p35
    %p37 = scmp.ne.s32.totalorder %s26, %s29
    %p38 = scmp.eq.s32.totalorder %s21, 1
    %p39 = por %p37, %p38
    %p40 = scmp.ne.s32.totalorder %s29, %s30
    %p41 = scmp.eq.s32.totalorder %s21, 0
    %p42 = por %p40, %p41
    %p43 = scmp.ne.s32.totalorder %s29, %s30
    %p44 = scmp.eq.s32.totalorder %s22, 1
    %p45 = por %p43, %p44
    %p47 = scmp.ne.s32.totalorder %s30, %s46
    %p48 = scmp.eq.s32.totalorder %s22, 0
    %p49 = por %p47, %p48
    %s50 = ssub.s32 %s16, %s23
    %p51 = scmp.eq.s32.totalorder %s50, 0
    %s53 = sadd.s32 %s52, 1
    %s54 = scalar_select %p51, %s52, %s53
    %p57 = pneg %p51
    %p58 = scmp.eq.s32.totalorder %s16, 1
    %p59 = por %p57, %p58
    %p60 = scmp.ne.s32.totalorder %s52, %s55
    %p61 = scmp.eq.s32.totalorder %s16, 0
    %p62 = por %p60, %p61
    %p63 = scmp.ne.s32.totalorder %s52, %s55
    %p64 = scmp.eq.s32.totalorder %s21, 1
    %p65 = por %p63, %p64
    %p66 = scmp.ne.s32.totalorder %s55, %s56
    %p67 = scmp.eq.s32.totalorder %s21, 0
    %p68 = por %p66, %p67
    %p69 = scmp.ne.s32.totalorder %s55, %s56
    %p70 = scmp.eq.s32.totalorder %s22, 1
    %p71 = por %p69, %p70
    %p73 = scmp.ne.s32.totalorder %s56, %s72
    %p74 = scmp.eq.s32.totalorder %s22, 0
    %p75 = por %p73, %p74
    %s77 = sadd.s32 %s76, 1
    %p80 = scmp.eq.s32.totalorder %s16, 1
    %p81 = scmp.ne.s32.totalorder %s76, %s78
    %p82 = scmp.eq.s32.totalorder %s16, 0
    %p83 = por %p81, %p82
    %p84 = scmp.ne.s32.totalorder %s76, %s78
    %p85 = scmp.eq.s32.totalorder %s21, 1
    %p86 = por %p84, %p85
    %p87 = scmp.ne.s32.totalorder %s78, %s79
    %p88 = scmp.eq.s32.totalorder %s21, 0
    %p89 = por %p87, %p88
    %p90 = scmp.ne.s32.totalorder %s78, %s79
    %p91 = scmp.eq.s32.totalorder %s22, 1
    %p92 = por %p90, %p91
    %p94 = scmp.ne.s32.totalorder %s79, %s93
    %p95 = scmp.eq.s32.totalorder %s22, 0
    %p96 = por %p94, %p95
    %s98 = sadd.s32 %s97, 1
    %p101 = scmp.eq.s32.totalorder %s16, 1
    %p102 = scmp.ne.s32.totalorder %s97, %s99
    %p103 = scmp.eq.s32.totalorder %s16, 0
    %p104 = por %p102, %p103
    %p105 = scmp.ne.s32.totalorder %s97, %s99
    %p106 = scmp.eq.s32.totalorder %s21, 1
    %p107 = por %p105, %p106
    %p108 = scmp.ne.s32.totalorder %s99, %s100
    %p109 = scmp.eq.s32.totalorder %s21, 0
    %p110 = por %p108, %p109
    %p111 = scmp.ne.s32.totalorder %s99, %s100
    %p112 = scmp.eq.s32.totalorder %s22, 1
    %p113 = por %p111, %p112
    %p115 = scmp.ne.s32.totalorder %s100, %s114
    %p116 = scmp.eq.s32.totalorder %s22, 0
    %p117 = por %p115, %p116
    %s119 = sadd.s32 %s118, 1
    %p122 = scmp.eq.s32.totalorder %s16, 1
    %p123 = scmp.ne.s32.totalorder %s118, %s120
    %p124 = scmp.eq.s32.totalorder %s16, 0
    %p125 = por %p123, %p124
    %p126 = scmp.ne.s32.totalorder %s118, %s120
    %p127 = scmp.eq.s32.totalorder %s21, 1
    %p128 = por %p126, %p127
    %p129 = scmp.ne.s32.totalorder %s120, %s121
    %p130 = scmp.eq.s32.totalorder %s21, 0
    %p131 = por %p129, %p130
    %p132 = scmp.ne.s32.totalorder %s120, %s121
    %p133 = scmp.eq.s32.totalorder %s22, 1
    %p134 = por %p132, %p133
    %p136 = scmp.ne.s32.totalorder %s121, %s135
    %p137 = scmp.eq.s32.totalorder %s22, 0
    %p138 = por %p136, %p137
    %s140 = sadd.s32 %s139, 1
    %p143 = scmp.eq.s32.totalorder %s16, 1
    %p144 = scmp.ne.s32.totalorder %s139, %s141
    %p145 = scmp.eq.s32.totalorder %s16, 0
    %p146 = por %p144, %p145
    %p147 = scmp.ne.s32.totalorder %s139, %s141
    %p148 = scmp.eq.s32.totalorder %s21, 1
    %p149 = por %p147, %p148
    %p150 = scmp.ne.s32.totalorder %s141, %s142
    %p151 = scmp.eq.s32.totalorder %s21, 0
    %p152 = por %p150, %p151
    %p153 = scmp.ne.s32.totalorder %s141, %s142
    %p154 = scmp.eq.s32.totalorder %s22, 1
    %p155 = por %p153, %p154
    %p157 = scmp.ne.s32.totalorder %s142, %s156
    %p158 = scmp.eq.s32.totalorder %s22, 0
    %p159 = por %p157, %p158
    %s161 = sadd.s32 %s160, 1
    %p164 = scmp.eq.s32.totalorder %s16, 1
    %p165 = scmp.ne.s32.totalorder %s160, %s162
    %p166 = scmp.eq.s32.totalorder %s16, 0
    %p167 = por %p165, %p166
    %p168 = scmp.ne.s32.totalorder %s160, %s162
    %p169 = scmp.eq.s32.totalorder %s21, 1
    %p170 = por %p168, %p169
    %p171 = scmp.ne.s32.totalorder %s162, %s163
    %p172 = scmp.eq.s32.totalorder %s21, 0
    %p173 = por %p171, %p172
    %p174 = scmp.ne.s32.totalorder %s162, %s163
    %p175 = scmp.eq.s32.totalorder %s22, 1
    %p176 = por %p174, %p175
    %p178 = scmp.ne.s32.totalorder %s163, %s177
    %p179 = scmp.eq.s32.totalorder %s22, 0
    %p180 = por %p178, %p179
    %s182 = sadd.s32 %s181, 1
    %p185 = scmp.eq.s32.totalorder %s16, 1
    %p186 = scmp.ne.s32.totalorder %s181, %s183
    %p187 = scmp.eq.s32.totalorder %s16, 0
    %p188 = por %p186, %p187
    %p189 = scmp.ne.s32.totalorder %s181, %s183
    %p190 = scmp.eq.s32.totalorder %s21, 1
    %p191 = por %p189, %p190
    %p192 = scmp.ne.s32.totalorder %s183, %s184
    %p193 = scmp.eq.s32.totalorder %s21, 0
    %p194 = por %p192, %p193
    %p195 = scmp.ne.s32.totalorder %s183, %s184
    %p196 = scmp.eq.s32.totalorder %s22, 1
    %p197 = por %p195, %p196
    %p199 = scmp.ne.s32.totalorder %s184, %s198
    %p200 = scmp.eq.s32.totalorder %s22, 0
    %p201 = por %p199, %p200
    %s203 = sadd.s32 %s202, 1
    %p206 = scmp.eq.s32.totalorder %s16, 1
    %p207 = scmp.ne.s32.totalorder %s202, %s204
    %p208 = scmp.eq.s32.totalorder %s16, 0
    %p209 = por %p207, %p208
    %p210 = scmp.ne.s32.totalorder %s202, %s204
    %p211 = scmp.eq.s32.totalorder %s21, 1
    %p212 = por %p210, %p211
    %p213 = scmp.ne.s32.totalorder %s204, %s205
    %p214 = scmp.eq.s32.totalorder %s21, 0
    %p215 = por %p213, %p214
    %p216 = scmp.ne.s32.totalorder %s204, %s205
    %p217 = scmp.eq.s32.totalorder %s22, 1
    %p218 = por %p216, %p217
    %p220 = scmp.ne.s32.totalorder %s205, %s219
    %p221 = scmp.eq.s32.totalorder %s22, 0
    %p222 = por %p220, %p221
    %s223 = ssub.s32 %s16, %s23
    %p224 = scmp.eq.s32.totalorder %s223, 0
    %s226 = sadd.s32 %s225, 1
    %s227 = scalar_select %p224, %s225, %s226
    %p230 = pneg %p224
    %p231 = scmp.eq.s32.totalorder %s16, 1
    %p232 = por %p230, %p231
    %p233 = scmp.ne.s32.totalorder %s225, %s228
    %p234 = scmp.eq.s32.totalorder %s16, 0
    %p235 = por %p233, %p234
    %p236 = scmp.ne.s32.totalorder %s225, %s228
    %p237 = scmp.eq.s32.totalorder %s21, 1
    %p238 = por %p236, %p237
    %p239 = scmp.ne.s32.totalorder %s228, %s229
    %p240 = scmp.eq.s32.totalorder %s21, 0
    %p241 = por %p239, %p240
    %p242 = scmp.ne.s32.totalorder %s228, %s229
    %p243 = scmp.eq.s32.totalorder %s22, 1
    %p244 = por %p242, %p243
    %p246 = scmp.ne.s32.totalorder %s229, %s245
    %p247 = scmp.eq.s32.totalorder %s22, 0
    %p248 = por %p246, %p247
    %p249 = scmp.le.s32.totalorder 1, %s16
    %p250 = scmp.lt.s32.totalorder %s16, 3
    %p251 = pnand %p249, %p250
    %p252 = pneg %p251
    // Predicated region
    $region9: #{critic_forward.1} parent=5 // pred_check
      _
    $region10: #{critic_forward.1} parent=5 // pred_check_branch
      %254 = sbr.rel (%p251) target = $region12
    $region11: #{critic_forward.1} parent=5 // pred_region
      %s255 = ssub.s32 %s16, 1
      // Predicated region
      $region13: #{critic_forward.1} parent=11 // pred_check
        %p256 = pneg %p89
      $region14: #{critic_forward.1} parent=11 // pred_check_branch
        %258 = sbr.rel (%p256) target = $region16
      $region15: #{critic_forward.1} parent=11 // pred_region
        _
      $region16: #{critic_forward.1} parent=11 // pred_fallthru
        _
      // Predicated region
      $region17: #{critic_forward.1} parent=11 // pred_check
        %p259 = pneg %p110
      $region18: #{critic_forward.1} parent=11 // pred_check_branch
        %261 = sbr.rel (%p259) target = $region20
      $region19: #{critic_forward.1} parent=11 // pred_region
        _
      $region20: #{critic_forward.1} parent=11 // pred_fallthru
        _
      // Predicated region
      $region21: #{critic_forward.1} parent=11 // pred_check
        %p262 = pneg %p131
      $region22: #{critic_forward.1} parent=11 // pred_check_branch
        %264 = sbr.rel (%p262) target = $region24
      $region23: #{critic_forward.1} parent=11 // pred_region
        _
      $region24: #{critic_forward.1} parent=11 // pred_fallthru
        _
      // Predicated region
      $region25: #{critic_forward.1} parent=11 // pred_check
        %p265 = pneg %p152
      $region26: #{critic_forward.1} parent=11 // pred_check_branch
        %267 = sbr.rel (%p265) target = $region28
      $region27: #{critic_forward.1} parent=11 // pred_region
        _
      $region28: #{critic_forward.1} parent=11 // pred_fallthru
        _
      // Predicated region
      $region29: #{critic_forward.1} parent=11 // pred_check
        %p268 = pneg %p173
      $region30: #{critic_forward.1} parent=11 // pred_check_branch
        %270 = sbr.rel (%p268) target = $region32
      $region31: #{critic_forward.1} parent=11 // pred_region
        _
      $region32: #{critic_forward.1} parent=11 // pred_fallthru
        _
      // Predicated region
      $region33: #{critic_forward.1} parent=11 // pred_check
        %p271 = pneg %p194
      $region34: #{critic_forward.1} parent=11 // pred_check_branch
        %273 = sbr.rel (%p271) target = $region36
      $region35: #{critic_forward.1} parent=11 // pred_region
        _
      $region36: #{critic_forward.1} parent=11 // pred_fallthru
        _
      // Predicated region
      $region37: #{critic_forward.1} parent=11 // pred_check
        %p274 = pneg %p215
      $region38: #{critic_forward.1} parent=11 // pred_check_branch
        %276 = sbr.rel (%p274) target = $region40
      $region39: #{critic_forward.1} parent=11 // pred_region
        _
      $region40: #{critic_forward.1} parent=11 // pred_fallthru
        _
    $region12: #{critic_forward.1} parent=5 // pred_fallthru
      _
    %p277 = scmp.lt.s32.totalorder %s16, 2
    // Predicated region
    $region41: #{critic_forward.1} parent=5 // pred_check
      %p278 = pneg %p277
    $region42: #{critic_forward.1} parent=5 // pred_check_branch
      %280 = sbr.rel (%p278) target = $region44
    $region43: #{critic_forward.1} parent=5 // pred_region
      // Predicated region
      $region45: #{critic_forward.1} parent=43 // pred_check
        %p281 = pneg %p36
      $region46: #{critic_forward.1} parent=43 // pred_check_branch
        %283 = sbr.rel (%p281) target = $region48
      $region47: #{critic_forward.1} parent=43 // pred_region
        %s284 = smul.u32 16, %s16
        %p285 = scmp.lt.s32.totalorder %s284, 31
        %s286 = scalar_select %p285, %s284, 31
        %s287 = smul.addr %s286, 8
        %s288 = scalar_lea.vmem %s0, %s287
        %s289 = smul.u32 16, %s16
      $region48: #{critic_forward.1} parent=43 // pred_fallthru
        _
      // Predicated region
      $region49: #{critic_forward.1} parent=43 // pred_check
        %p290 = pneg %p62
      $region50: #{critic_forward.1} parent=43 // pred_check_branch
        %292 = sbr.rel (%p290) target = $region52
      $region51: #{critic_forward.1} parent=43 // pred_region
        %s293 = smul.u32 16, %s16
        %p294 = scmp.lt.s32.totalorder %s293, 31
        %s295 = scalar_select %p294, %s293, 31
        %s296 = smul.addr %s295, 8
        %s297 = scalar_lea.vmem %s1, %s296
        %s298 = smul.u32 16, %s16
      $region52: #{critic_forward.1} parent=43 // pred_fallthru
        _
    $region44: #{critic_forward.1} parent=5 // pred_fallthru
      _
    %p299 = scmp.le.s32.totalorder 1, %s16
    %p300 = scmp.lt.s32.totalorder %s16, 3
    %p301 = pnand %p299, %p300
    %p302 = pneg %p301
    // Predicated region
    $region53: #{critic_forward.1} parent=5 // pred_check
      _
    $region54: #{critic_forward.1} parent=5 // pred_check_branch
      %304 = sbr.rel (%p301) target = $region56
    $region55: #{critic_forward.1} parent=5 // pred_region
      %s305 = ssub.s32 %s16, 1
      %s306 = smul.u32 16, %s21
      %p307 = scmp.lt.s32.totalorder %s306, 31
      %s308 = scalar_select %p307, %s306, 31
      %s309 = smul.addr %s308, 8
      %s310 = scalar_lea.vmem %s0, %s309
      %p311 = pneg %p42
      %p312 = pneg %p39
      %s313 = smul.u32 16, %s21
      %p314 = scmp.lt.s32.totalorder %s313, 31
      %s315 = scalar_select %p314, %s313, 31
      %s316 = smul.addr %s315, 8
      %s317 = scalar_lea.vmem %s1, %s316
      %p318 = pneg %p68
      %p319 = pneg %p65
      %p320 = pneg %p89
      %p321 = pneg %p86
      %p322 = pneg %p110
      %p323 = pneg %p107
      %p324 = pneg %p131
      %p325 = pneg %p128
      %p326 = pneg %p152
      %p327 = pneg %p149
      %p328 = pneg %p173
      %p329 = pneg %p170
      %p330 = pneg %p194
      %p331 = pneg %p191
      %p332 = pneg %p215
      %p333 = pneg %p212
      %p334 = pneg %p241
      %p335 = pneg %p238
      %s336 = smul.u32 16, %s21
      %p337 = scmp.lt.s32.totalorder %s336, 31
      %s338 = scalar_select %p337, %s336, 31
      %s339 = smul.addr %s338, 8
      %s340 = scalar_lea.vmem %s9, %s339
      %s341 = smul.u32 16, %s21
      %p342 = scmp.lt.s32.totalorder %s341, 31
      %s343 = scalar_select %p342, %s341, 31
      %s344 = smul.addr %s343, 8
      %s345 = scalar_lea.vmem %s0, %s344
      %s346 = smul.u32 16, %s21
      %s347 = smul.u32 16, %s21
      %p348 = scmp.lt.s32.totalorder %s347, 31
      %s349 = scalar_select %p348, %s347, 31
      %s350 = smul.addr %s349, 8
      %s351 = scalar_lea.vmem %s1, %s350
      %s352 = smul.u32 16, %s21
      %s353 = smul.u32 16, %s21
      %p354 = scmp.lt.s32.totalorder %s353, 31
      %s355 = scalar_select %p354, %s353, 31
      %s356 = smul.addr %s355, 8
      %s357 = scalar_lea.vmem %s9, %s356
      %s358 = smul.u32 16, %s21
      %v359 = vld [vmem:[%s345] sm:$0xff]
      %v360 = vld [vmem:[%s345 + $0x8] sm:$0xff]
      %v361 = vld [vmem:[%s345 + $0x10] sm:$0xff]
      %v362 = vld [vmem:[%s345 + $0x18] sm:$0xff]
      %v363 = vld [vmem:[%s345 + $0x20] sm:$0xff]
      %v364 = vld [vmem:[%s345 + $0x28] sm:$0xff]
      %v365 = vld [vmem:[%s345 + $0x30] sm:$0xff]
      %v366 = vld [vmem:[%s345 + $0x38] sm:$0xff]
      %v367 = vld [vmem:[%s345 + $0x40] sm:$0xff]
      %v368 = vld [vmem:[%s345 + $0x48] sm:$0xff]
      %v369 = vld [vmem:[%s345 + $0x50] sm:$0xff]
      %v370 = vld [vmem:[%s345 + $0x58] sm:$0xff]
      %v371 = vld [vmem:[%s345 + $0x60] sm:$0xff]
      %v372 = vld [vmem:[%s345 + $0x68] sm:$0xff]
      %v373 = vld [vmem:[%s345 + $0x70] sm:$0xff]
      %v374 = vld [vmem:[%s345 + $0x78] sm:$0xff]
      %v375 = vld [vmem:[%s2] sm:$0xff]
      %v376 = vld [vmem:[%s2 + $0x8] sm:$0xff]
      %v377 = vld [vmem:[%s351] sm:$0xff]
      %v378 = vld [vmem:[%s351 + $0x8] sm:$0xff]
      %v379 = vld [vmem:[%s351 + $0x10] sm:$0xff]
      %v380 = vld [vmem:[%s351 + $0x18] sm:$0xff]
      %v381 = vld [vmem:[%s351 + $0x20] sm:$0xff]
      %v382 = vld [vmem:[%s351 + $0x28] sm:$0xff]
      %v383 = vld [vmem:[%s351 + $0x30] sm:$0xff]
      %v384 = vld [vmem:[%s351 + $0x38] sm:$0xff]
      %v385 = vld [vmem:[%s351 + $0x40] sm:$0xff]
      %v386 = vld [vmem:[%s351 + $0x48] sm:$0xff]
      %v387 = vld [vmem:[%s351 + $0x50] sm:$0xff]
      %v388 = vld [vmem:[%s351 + $0x58] sm:$0xff]
      %v389 = vld [vmem:[%s351 + $0x60] sm:$0xff]
      %v390 = vld [vmem:[%s351 + $0x68] sm:$0xff]
      %v391 = vld [vmem:[%s351 + $0x70] sm:$0xff]
      %v392 = vld [vmem:[%s351 + $0x78] sm:$0xff]
      %v393 = vld [vmem:[%s3] sm:$0xff]
      %vm394 = vcmask 64512
      %v396 = vsel %vm394, %v377, 0
      %v399 = vsel %vm394, %v378, 0
      %v402 = vsel %vm394, %v379, 0
      %v405 = vsel %vm394, %v380, 0
      %v408 = vsel %vm394, %v381, 0
      %v411 = vsel %vm394, %v382, 0
      %v414 = vsel %vm394, %v383, 0
      %v417 = vsel %vm394, %v384, 0
      %v420 = vsel %vm394, %v385, 0
      %v423 = vsel %vm394, %v386, 0
      %v426 = vsel %vm394, %v387, 0
      %v429 = vsel %vm394, %v388, 0
      %v432 = vsel %vm394, %v389, 0
      %v435 = vsel %vm394, %v390, 0
      %v438 = vsel %vm394, %v391, 0
      %v441 = vsel %vm394, %v392, 0
      %443 = vmatprep.subr.mxu0 0.0
      %444 = vmatpush1.msra.mxu0 %v393
      %445 = vmatprep.subr.mxu0 0.0
      %446 = vmatpush1.msra.mxu0 0.0
      %447 = vmatprep.subr.mxu0 0.0
      %448 = vmatpush1.msra.mxu0 0.0
      %449 = vmatprep.subr.mxu0 0.0
      %450 = vmatpush1.msra.mxu0 0.0
      %451 = vmatprep.subr.mxu0 0.0
      %452 = vmatpush1.msra.mxu0 0.0
      %453 = vmatprep.subr.mxu0 0.0
      %454 = vmatpush1.msra.mxu0 0.0
      %455 = vmatprep.subr.mxu0 0.0
      %456 = vmatpush1.msra.mxu0 0.0
      %457 = vmatprep.subr.mxu0 0.0
      %458 = vmatpush1.msra.mxu0 0.0
      %459 = vmatprep.subr.mxu0 0.0
      %460 = vmatpush1.msra.mxu0 0.0
      %461 = vmatprep.subr.mxu0 0.0
      %462 = vmatpush1.msra.mxu0 0.0
      %463 = vmatprep.subr.mxu0 0.0
      %464 = vmatpush1.msra.mxu0 0.0
      %465 = vmatprep.subr.mxu0 0.0
      %466 = vmatpush1.msra.mxu0 0.0
      %467 = vmatprep.subr.mxu0 0.0
      %468 = vmatpush1.msra.mxu0 0.0
      %469 = vmatprep.subr.mxu0 0.0
      %470 = vmatpush1.msra.mxu0 0.0
      %471 = vmatprep.subr.mxu0 0.0
      %472 = vmatpush1.msra.mxu0 0.0
      %473 = vmatprep.subr.mxu0 0.0
      %474 = vmatpush1.msra.mxu0 0.0
      %475 = vmatprep.subr.mxu0 0.0
      %476 = vmatpush1.msra.mxu0 0.0
      %477 = vmatprep.subr.mxu0 0.0
      %478 = vmatpush1.msra.mxu0 0.0
      %479 = vmatprep.subr.mxu0 0.0
      %480 = vmatpush1.msra.mxu0 0.0
      %481 = vmatprep.subr.mxu0 0.0
      %482 = vmatpush1.msra.mxu0 0.0
      %483 = vmatprep.subr.mxu0 0.0
      %484 = vmatpush1.msra.mxu0 0.0
      %485 = vmatprep.subr.mxu0 0.0
      %486 = vmatpush1.msra.mxu0 0.0
      %487 = vmatprep.subr.mxu0 0.0
      %488 = vmatpush1.msra.mxu0 0.0
      %489 = vmatprep.subr.mxu0 0.0
      %490 = vmatpush1.msra.mxu0 0.0
      %491 = vmatprep.subr.mxu0 0.0
      %492 = vmatpush1.msra.mxu0 0.0
      %493 = vmatprep.subr.mxu0 0.0
      %494 = vmatpush1.msra.mxu0 0.0
      %495 = vmatprep.subr.mxu0 0.0
      %496 = vmatpush1.msra.mxu0 0.0
      %497 = vmatprep.subr.mxu0 0.0
      %498 = vmatpush1.msra.mxu0 0.0
      %499 = vmatprep.subr.mxu0 0.0
      %500 = vmatpush1.msra.mxu0 0.0
      %501 = vmatprep.subr.mxu0 0.0
      %502 = vmatpush1.msra.mxu0 0.0
      %503 = vmatprep.subr.mxu0 0.0
      %504 = vmatpush1.msra.mxu0 0.0
      %505 = vmatprep.subr.mxu0 0.0
      %506 = vmatpush1.msra.mxu0 0.0
      %507 = vmatprep.mubr.f32.mxu0 0.0
      %508 = vmatmul.mubr.f32.gmra.mrb[0].mxu0 %v396
      %v509 = vpop.f32.mrb[0].mxu0
      %v510 = vadd.f32 0.0, %v509
      %v511 = vpop.f32.mrb[0].mxu0
      %512 = vmatprep.mubr.f32.mxu0 0.0
      %513 = vmatmul.mubr.f32.gmra.mrb[0].mxu0 %v399
      %v514 = vpop.f32.mrb[0].mxu0
      %v515 = vadd.f32 0.0, %v514
      %v516 = vpop.f32.mrb[0].mxu0
      %517 = vmatprep.mubr.f32.mxu0 0.0
      %518 = vmatmul.mubr.f32.gmra.mrb[0].mxu0 %v402
      %v519 = vpop.f32.mrb[0].mxu0
      %v520 = vadd.f32 0.0, %v519
      %v521 = vpop.f32.mrb[0].mxu0
      %522 = vmatprep.mubr.f32.mxu0 0.0
      %523 = vmatmul.mubr.f32.gmra.mrb[0].mxu0 %v405
      %v524 = vpop.f32.mrb[0].mxu0
      %v525 = vadd.f32 0.0, %v524
      %v526 = vpop.f32.mrb[0].mxu0
      %527 = vmatprep.mubr.f32.mxu0 0.0
      %528 = vmatmul.mubr.f32.gmra.mrb[0].mxu0 %v408
      %v529 = vpop.f32.mrb[0].mxu0
      %v530 = vadd.f32 0.0, %v529
      %v531 = vpop.f32.mrb[0].mxu0
      %532 = vmatprep.mubr.f32.mxu0 0.0
      %533 = vmatmul.mubr.f32.gmra.mrb[0].mxu0 %v411
      %v534 = vpop.f32.mrb[0].mxu0
      %v535 = vadd.f32 0.0, %v534
      %v536 = vpop.f32.mrb[0].mxu0
      %537 = vmatprep.mubr.f32.mxu0 0.0
      %538 = vmatmul.mubr.f32.gmra.mrb[0].mxu0 %v414
      %v539 = vpop.f32.mrb[0].mxu0
      %v540 = vadd.f32 0.0, %v539
      %v541 = vpop.f32.mrb[0].mxu0
      %542 = vmatprep.mubr.f32.mxu0 0.0
      %543 = vmatmul.mubr.f32.gmra.mrb[0].mxu0 %v417
      %v544 = vpop.f32.mrb[0].mxu0
      %v545 = vadd.f32 0.0, %v544
      %v546 = vpop.f32.mrb[0].mxu0
      %547 = vmatprep.mubr.f32.mxu0 0.0
      %548 = vmatmul.mubr.f32.gmra.mrb[0].mxu0 %v420
      %v549 = vpop.f32.mrb[0].mxu0
      %v550 = vadd.f32 0.0, %v549
      %v551 = vpop.f32.mrb[0].mxu0
      %552 = vmatprep.mubr.f32.mxu0 0.0
      %553 = vmatmul.mubr.f32.gmra.mrb[0].mxu0 %v423
      %v554 = vpop.f32.mrb[0].mxu0
      %v555 = vadd.f32 0.0, %v554
      %v556 = vpop.f32.mrb[0].mxu0
      %557 = vmatprep.mubr.f32.mxu0 0.0
      %558 = vmatmul.mubr.f32.gmra.mrb[0].mxu0 %v426
      %v559 = vpop.f32.mrb[0].mxu0
      %v560 = vadd.f32 0.0, %v559
      %v561 = vpop.f32.mrb[0].mxu0
      %562 = vmatprep.mubr.f32.mxu0 0.0
      %563 = vmatmul.mubr.f32.gmra.mrb[0].mxu0 %v429
      %v564 = vpop.f32.mrb[0].mxu0
      %v565 = vadd.f32 0.0, %v564
      %v566 = vpop.f32.mrb[0].mxu0
      %567 = vmatprep.mubr.f32.mxu0 0.0
      %568 = vmatmul.mubr.f32.gmra.mrb[0].mxu0 %v432
      %v569 = vpop.f32.mrb[0].mxu0
      %v570 = vadd.f32 0.0, %v569
      %v571 = vpop.f32.mrb[0].mxu0
      %572 = vmatprep.mubr.f32.mxu0 0.0
      %573 = vmatmul.mubr.f32.gmra.mrb[0].mxu0 %v435
      %v574 = vpop.f32.mrb[0].mxu0
      %v575 = vadd.f32 0.0, %v574
      %v576 = vpop.f32.mrb[0].mxu0
      %577 = vmatprep.mubr.f32.mxu0 0.0
      %578 = vmatmul.mubr.f32.gmra.mrb[0].mxu0 %v438
      %v579 = vpop.f32.mrb[0].mxu0
      %v580 = vadd.f32 0.0, %v579
      %v581 = vpop.f32.mrb[0].mxu0
      %582 = vmatprep.mubr.f32.mxu0 0.0
      %583 = vmatmul.mubr.f32.gmra.mrb[0].mxu0 %v441
      %v584 = vpop.f32.mrb[0].mxu0
      %v585 = vadd.f32 0.0, %v584
      %v586 = vpop.f32.mrb[0].mxu0
      %587 = vdwg.mxu0
      %vm588 = vcmask 130048
      %v590 = vsel %vm588, %v359, 0
      %v593 = vsel %vm588, %v360, 0
      %v596 = vsel %vm588, %v361, 0
      %v599 = vsel %vm588, %v362, 0
      %v602 = vsel %vm588, %v363, 0
      %v605 = vsel %vm588, %v364, 0
      %v608 = vsel %vm588, %v365, 0
      %v611 = vsel %vm588, %v366, 0
      %v614 = vsel %vm588, %v367, 0
      %v617 = vsel %vm588, %v368, 0
      %v620 = vsel %vm588, %v369, 0
      %v623 = vsel %vm588, %v370, 0
      %v626 = vsel %vm588, %v371, 0
      %v629 = vsel %vm588, %v372, 0
      %v632 = vsel %vm588, %v373, 0
      %v635 = vsel %vm588, %v374, 0
      %637 = vmatprep.subr.mxu0 0.0
      %638 = vmatpush1.msra.mxu0 %v375
      %639 = vmatprep.subr.mxu0 0.0
      %640 = vmatpush1.msra.mxu0 %v376
      %641 = vmatprep.subr.mxu0 0.0
      %642 = vmatpush1.msra.mxu0 0.0
      %643 = vmatprep.subr.mxu0 0.0
      %644 = vmatpush1.msra.mxu0 0.0
      %645 = vmatprep.subr.mxu0 0.0
      %646 = vmatpush1.msra.mxu0 0.0
      %647 = vmatprep.subr.mxu0 0.0
      %648 = vmatpush1.msra.mxu0 0.0
      %649 = vmatprep.subr.mxu0 0.0
      %650 = vmatpush1.msra.mxu0 0.0
      %651 = vmatprep.subr.mxu0 0.0
      %652 = vmatpush1.msra.mxu0 0.0
      %653 = vmatprep.subr.mxu0 0.0
      %654 = vmatpush1.msra.mxu0 0.0
      %655 = vmatprep.subr.mxu0 0.0
      %656 = vmatpush1.msra.mxu0 0.0
      %657 = vmatprep.subr.mxu0 0.0
      %658 = vmatpush1.msra.mxu0 0.0
      %659 = vmatprep.subr.mxu0 0.0
      %660 = vmatpush1.msra.mxu0 0.0
      %661 = vmatprep.subr.mxu0 0.0
      %662 = vmatpush1.msra.mxu0 0.0
      %663 = vmatprep.subr.mxu0 0.0
      %664 = vmatpush1.msra.mxu0 0.0
      %665 = vmatprep.subr.mxu0 0.0
      %666 = vmatpush1.msra.mxu0 0.0
      %667 = vmatprep.subr.mxu0 0.0
      %668 = vmatpush1.msra.mxu0 0.0
      %669 = vmatprep.subr.mxu0 0.0
      %670 = vmatpush1.msra.mxu0 0.0
      %671 = vmatprep.subr.mxu0 0.0
      %672 = vmatpush1.msra.mxu0 0.0
      %673 = vmatprep.subr.mxu0 0.0
      %674 = vmatpush1.msra.mxu0 0.0
      %675 = vmatprep.subr.mxu0 0.0
      %676 = vmatpush1.msra.mxu0 0.0
      %677 = vmatprep.subr.mxu0 0.0
      %678 = vmatpush1.msra.mxu0 0.0
      %679 = vmatprep.subr.mxu0 0.0
      %680 = vmatpush1.msra.mxu0 0.0
      %681 = vmatprep.subr.mxu0 0.0
      %682 = vmatpush1.msra.mxu0 0.0
      %683 = vmatprep.subr.mxu0 0.0
      %684 = vmatpush1.msra.mxu0 0.0
      %685 = vmatprep.subr.mxu0 0.0
      %686 = vmatpush1.msra.mxu0 0.0
      %687 = vmatprep.subr.mxu0 0.0
      %688 = vmatpush1.msra.mxu0 0.0
      %689 = vmatprep.subr.mxu0 0.0
      %690 = vmatpush1.msra.mxu0 0.0
      %691 = vmatprep.subr.mxu0 0.0
      %692 = vmatpush1.msra.mxu0 0.0
      %693 = vmatprep.subr.mxu0 0.0
      %694 = vmatpush1.msra.mxu0 0.0
      %695 = vmatprep.subr.mxu0 0.0
      %696 = vmatpush1.msra.mxu0 0.0
      %697 = vmatprep.subr.mxu0 0.0
      %698 = vmatpush1.msra.mxu0 0.0
      %699 = vmatprep.subr.mxu0 0.0
      %700 = vmatpush1.msra.mxu0 0.0
      %701 = vmatprep.mubr.f32.mxu0 0.0
      %702 = vmatmul.mubr.f32.gmra.mrb[0].mxu0 %v590
      %v703 = vpop.f32.mrb[0].mxu0
      %v704 = vadd.f32 %v510, %v703
      %v705 = vpop.f32.mrb[0].mxu0
      %706 = vmatprep.mubr.f32.mxu0 0.0
      %707 = vmatmul.mubr.f32.gmra.mrb[0].mxu0 %v593
      %v708 = vpop.f32.mrb[0].mxu0
      %v709 = vadd.f32 %v515, %v708
      %v710 = vpop.f32.mrb[0].mxu0
      %711 = vmatprep.mubr.f32.mxu0 0.0
      %712 = vmatmul.mubr.f32.gmra.mrb[0].mxu0 %v596
      %v713 = vpop.f32.mrb[0].mxu0
      %v714 = vadd.f32 %v520, %v713
      %v715 = vpop.f32.mrb[0].mxu0
      %716 = vmatprep.mubr.f32.mxu0 0.0
      %717 = vmatmul.mubr.f32.gmra.mrb[0].mxu0 %v599
      %v718 = vpop.f32.mrb[0].mxu0
      %v719 = vadd.f32 %v525, %v718
      %v720 = vpop.f32.mrb[0].mxu0
      %721 = vmatprep.mubr.f32.mxu0 0.0
      %722 = vmatmul.mubr.f32.gmra.mrb[0].mxu0 %v602
      %v723 = vpop.f32.mrb[0].mxu0
      %v724 = vadd.f32 %v530, %v723
      %v725 = vpop.f32.mrb[0].mxu0
      %726 = vmatprep.mubr.f32.mxu0 0.0
      %727 = vmatmul.mubr.f32.gmra.mrb[0].mxu0 %v605
      %v728 = vpop.f32.mrb[0].mxu0
      %v729 = vadd.f32 %v535, %v728
      %v730 = vpop.f32.mrb[0].mxu0
      %731 = vmatprep.mubr.f32.mxu0 0.0
      %732 = vmatmul.mubr.f32.gmra.mrb[0].mxu0 %v608
      %v733 = vpop.f32.mrb[0].mxu0
      %v734 = vadd.f32 %v540, %v733
      %v735 = vpop.f32.mrb[0].mxu0
      %736 = vmatprep.mubr.f32.mxu0 0.0
      %737 = vmatmul.mubr.f32.gmra.mrb[0].mxu0 %v611
      %v738 = vpop.f32.mrb[0].mxu0
      %v739 = vadd.f32 %v545, %v738
      %v740 = vpop.f32.mrb[0].mxu0
      %741 = vmatprep.mubr.f32.mxu0 0.0
      %742 = vmatmul.mubr.f32.gmra.mrb[0].mxu0 %v614
      %v743 = vpop.f32.mrb[0].mxu0
      %v744 = vadd.f32 %v550, %v743
      %v745 = vpop.f32.mrb[0].mxu0
      %746 = vmatprep.mubr.f32.mxu0 0.0
      %747 = vmatmul.mubr.f32.gmra.mrb[0].mxu0 %v617
      %v748 = vpop.f32.mrb[0].mxu0
      %v749 = vadd.f32 %v555, %v748
      %v750 = vpop.f32.mrb[0].mxu0
      %751 = vmatprep.mubr.f32.mxu0 0.0
      %752 = vmatmul.mubr.f32.gmra.mrb[0].mxu0 %v620
      %v753 = vpop.f32.mrb[0].mxu0
      %v754 = vadd.f32 %v560, %v753
      %v755 = vpop.f32.mrb[0].mxu0
      %756 = vmatprep.mubr.f32.mxu0 0.0
      %757 = vmatmul.mubr.f32.gmra.mrb[0].mxu0 %v623
      %v758 = vpop.f32.mrb[0].mxu0
      %v759 = vadd.f32 %v565, %v758
      %v760 = vpop.f32.mrb[0].mxu0
      %761 = vmatprep.mubr.f32.mxu0 0.0
      %762 = vmatmul.mubr.f32.gmra.mrb[0].mxu0 %v626
      %v763 = vpop.f32.mrb[0].mxu0
      %v764 = vadd.f32 %v570, %v763
      %v765 = vpop.f32.mrb[0].mxu0
      %766 = vmatprep.mubr.f32.mxu0 0.0
      %767 = vmatmul.mubr.f32.gmra.mrb[0].mxu0 %v629
      %v768 = vpop.f32.mrb[0].mxu0
      %v769 = vadd.f32 %v575, %v768
      %v770 = vpop.f32.mrb[0].mxu0
      %771 = vmatprep.mubr.f32.mxu0 0.0
      %772 = vmatmul.mubr.f32.gmra.mrb[0].mxu0 %v632
      %v773 = vpop.f32.mrb[0].mxu0
      %v774 = vadd.f32 %v580, %v773
      %v775 = vpop.f32.mrb[0].mxu0
      %776 = vmatprep.mubr.f32.mxu0 0.0
      %777 = vmatmul.mubr.f32.gmra.mrb[0].mxu0 %v635
      %v778 = vpop.f32.mrb[0].mxu0
      %v779 = vadd.f32 %v585, %v778
      %v780 = vpop.f32.mrb[0].mxu0
      %781 = vdwg.mxu0
      %v782 = vld [vmem:[%s4] sm:$0x1]
      %v784 = vlaneseq
      %v785 = vshrl.u32 %v784, 7
      %v786 = vsub.s32 0, %v785
      %v787 = vrot.slane %v782, %v786
      %v789 = vadd.f32 %v704, %v787
      %v790 = vadd.f32 %v709, %v787
      %v791 = vadd.f32 %v714, %v787
      %v792 = vadd.f32 %v719, %v787
      %v793 = vadd.f32 %v724, %v787
      %v794 = vadd.f32 %v729, %v787
      %v795 = vadd.f32 %v734, %v787
      %v796 = vadd.f32 %v739, %v787
      %v797 = vadd.f32 %v744, %v787
      %v798 = vadd.f32 %v749, %v787
      %v799 = vadd.f32 %v754, %v787
      %v800 = vadd.f32 %v759, %v787
      %v801 = vadd.f32 %v764, %v787
      %v802 = vadd.f32 %v769, %v787
      %v803 = vadd.f32 %v774, %v787
      %v804 = vadd.f32 %v779, %v787
      %v805 = vmax.f32 %v789, 0.0
      %v806 = vmax.f32 %v790, 0.0
      %v807 = vmax.f32 %v791, 0.0
      %v808 = vmax.f32 %v792, 0.0
      %v809 = vmax.f32 %v793, 0.0
      %v810 = vmax.f32 %v794, 0.0
      %v811 = vmax.f32 %v795, 0.0
      %v812 = vmax.f32 %v796, 0.0
      %v813 = vmax.f32 %v797, 0.0
      %v814 = vmax.f32 %v798, 0.0
      %v815 = vmax.f32 %v799, 0.0
      %v816 = vmax.f32 %v800, 0.0
      %v817 = vmax.f32 %v801, 0.0
      %v818 = vmax.f32 %v802, 0.0
      %v819 = vmax.f32 %v803, 0.0
      %v820 = vmax.f32 %v804, 0.0
      %v821 = vld [vmem:[%s5] sm:$0xff]
      %v822 = vld [vmem:[%s5 + $0x8] sm:$0xff]
      %v823 = vld [vmem:[%s5 + $0x10] sm:$0xff]
      %v824 = vld [vmem:[%s5 + $0x18] sm:$0xff]
      %v825 = vld [vmem:[%s5 + $0x20] sm:$0xff]
      %v826 = vld [vmem:[%s5 + $0x28] sm:$0xff]
      %v827 = vld [vmem:[%s5 + $0x30] sm:$0xff]
      %v828 = vld [vmem:[%s5 + $0x38] sm:$0xff]
      %v829 = vld [vmem:[%s5 + $0x40] sm:$0xff]
      %v830 = vld [vmem:[%s5 + $0x48] sm:$0xff]
      %v831 = vld [vmem:[%s5 + $0x50] sm:$0xff]
      %v832 = vld [vmem:[%s5 + $0x58] sm:$0xff]
      %v833 = vld [vmem:[%s5 + $0x60] sm:$0xff]
      %v834 = vld [vmem:[%s5 + $0x68] sm:$0xff]
      %v835 = vld [vmem:[%s5 + $0x70] sm:$0xff]
      %v836 = vld [vmem:[%s5 + $0x78] sm:$0xff]
      %v837 = vld [vmem:[%s6] sm:$0x1]
      %v839 = vlaneseq
      %v840 = vshrl.u32 %v839, 7
      %v841 = vsub.s32 0, %v840
      %v842 = vrot.slane %v837, %v841
      %844 = vmatprep.subr.mxu0 0.0
      %845 = vmatpush1.msra.mxu0 %v821
      %846 = vmatprep.subr.mxu0 0.0
      %847 = vmatpush1.msra.mxu0 %v822
      %848 = vmatprep.subr.mxu0 0.0
      %849 = vmatpush1.msra.mxu0 %v823
      %850 = vmatprep.subr.mxu0 0.0
      %851 = vmatpush1.msra.mxu0 %v824
      %852 = vmatprep.subr.mxu0 0.0
      %853 = vmatpush1.msra.mxu0 %v825
      %854 = vmatprep.subr.mxu0 0.0
      %855 = vmatpush1.msra.mxu0 %v826
      %856 = vmatprep.subr.mxu0 0.0
      %857 = vmatpush1.msra.mxu0 %v827
      %858 = vmatprep.subr.mxu0 0.0
      %859 = vmatpush1.msra.mxu0 %v828
      %860 = vmatprep.subr.mxu0 0.0
      %861 = vmatpush1.msra.mxu0 %v829
      %862 = vmatprep.subr.mxu0 0.0
      %863 = vmatpush1.msra.mxu0 %v830
      %864 = vmatprep.subr.mxu0 0.0
      %865 = vmatpush1.msra.mxu0 %v831
      %866 = vmatprep.subr.mxu0 0.0
      %867 = vmatpush1.msra.mxu0 %v832
      %868 = vmatprep.subr.mxu0 0.0
      %869 = vmatpush1.msra.mxu0 %v833
      %870 = vmatprep.subr.mxu0 0.0
      %871 = vmatpush1.msra.mxu0 %v834
      %872 = vmatprep.subr.mxu0 0.0
      %873 = vmatpush1.msra.mxu0 %v835
      %874 = vmatprep.subr.mxu0 0.0
      %875 = vmatpush1.msra.mxu0 %v836
      %876 = vmatprep.subr.mxu0 0.0
      %877 = vmatpush1.msra.mxu0 0.0
      %878 = vmatprep.subr.mxu0 0.0
      %879 = vmatpush1.msra.mxu0 0.0
      %880 = vmatprep.subr.mxu0 0.0
      %881 = vmatpush1.msra.mxu0 0.0
      %882 = vmatprep.subr.mxu0 0.0
      %883 = vmatpush1.msra.mxu0 0.0
      %884 = vmatprep.subr.mxu0 0.0
      %885 = vmatpush1.msra.mxu0 0.0
      %886 = vmatprep.subr.mxu0 0.0
      %887 = vmatpush1.msra.mxu0 0.0
      %888 = vmatprep.subr.mxu0 0.0
      %889 = vmatpush1.msra.mxu0 0.0
      %890 = vmatprep.subr.mxu0 0.0
      %891 = vmatpush1.msra.mxu0 0.0
      %892 = vmatprep.subr.mxu0 0.0
      %893 = vmatpush1.msra.mxu0 0.0
      %894 = vmatprep.subr.mxu0 0.0
      %895 = vmatpush1.msra.mxu0 0.0
      %896 = vmatprep.subr.mxu0 0.0
      %897 = vmatpush1.msra.mxu0 0.0
      %898 = vmatprep.subr.mxu0 0.0
      %899 = vmatpush1.msra.mxu0 0.0
      %900 = vmatprep.subr.mxu0 0.0
      %901 = vmatpush1.msra.mxu0 0.0
      %902 = vmatprep.subr.mxu0 0.0
      %903 = vmatpush1.msra.mxu0 0.0
      %904 = vmatprep.subr.mxu0 0.0
      %905 = vmatpush1.msra.mxu0 0.0
      %906 = vmatprep.subr.mxu0 0.0
      %907 = vmatpush1.msra.mxu0 0.0
      %908 = vmatprep.mubr.f32.mxu0 0.0
      %909 = vmatmul.mubr.f32.gmra.mrb[0].mxu0 %v805
      %v910 = vpop.f32.mrb[0].mxu0
      %v911 = vadd.f32 %v842, %v910
      %v912 = vpop.f32.mrb[0].mxu0
      %913 = vmatprep.mubr.f32.mxu0 0.0
      %914 = vmatmul.mubr.f32.gmra.mrb[0].mxu0 %v806
      %v915 = vpop.f32.mrb[0].mxu0
      %v916 = vadd.f32 %v842, %v915
      %v917 = vpop.f32.mrb[0].mxu0
      %918 = vmatprep.mubr.f32.mxu0 0.0
      %919 = vmatmul.mubr.f32.gmra.mrb[0].mxu0 %v807
      %v920 = vpop.f32.mrb[0].mxu0
      %v921 = vadd.f32 %v842, %v920
      %v922 = vpop.f32.mrb[0].mxu0
      %923 = vmatprep.mubr.f32.mxu0 0.0
      %924 = vmatmul.mubr.f32.gmra.mrb[0].mxu0 %v808
      %v925 = vpop.f32.mrb[0].mxu0
      %v926 = vadd.f32 %v842, %v925
      %v927 = vpop.f32.mrb[0].mxu0
      %928 = vmatprep.mubr.f32.mxu0 0.0
      %929 = vmatmul.mubr.f32.gmra.mrb[0].mxu0 %v809
      %v930 = vpop.f32.mrb[0].mxu0
      %v931 = vadd.f32 %v842, %v930
      %v932 = vpop.f32.mrb[0].mxu0
      %933 = vmatprep.mubr.f32.mxu0 0.0
      %934 = vmatmul.mubr.f32.gmra.mrb[0].mxu0 %v810
      %v935 = vpop.f32.mrb[0].mxu0
      %v936 = vadd.f32 %v842, %v935
      %v937 = vpop.f32.mrb[0].mxu0
      %938 = vmatprep.mubr.f32.mxu0 0.0
      %939 = vmatmul.mubr.f32.gmra.mrb[0].mxu0 %v811
      %v940 = vpop.f32.mrb[0].mxu0
      %v941 = vadd.f32 %v842, %v940
      %v942 = vpop.f32.mrb[0].mxu0
      %943 = vmatprep.mubr.f32.mxu0 0.0
      %944 = vmatmul.mubr.f32.gmra.mrb[0].mxu0 %v812
      %v945 = vpop.f32.mrb[0].mxu0
      %v946 = vadd.f32 %v842, %v945
      %v947 = vpop.f32.mrb[0].mxu0
      %948 = vmatprep.mubr.f32.mxu0 0.0
      %949 = vmatmul.mubr.f32.gmra.mrb[0].mxu0 %v813
      %v950 = vpop.f32.mrb[0].mxu0
      %v951 = vadd.f32 %v842, %v950
      %v952 = vpop.f32.mrb[0].mxu0
      %953 = vmatprep.mubr.f32.mxu0 0.0
      %954 = vmatmul.mubr.f32.gmra.mrb[0].mxu0 %v814
      %v955 = vpop.f32.mrb[0].mxu0
      %v956 = vadd.f32 %v842, %v955
      %v957 = vpop.f32.mrb[0].mxu0
      %958 = vmatprep.mubr.f32.mxu0 0.0
      %959 = vmatmul.mubr.f32.gmra.mrb[0].mxu0 %v815
      %v960 = vpop.f32.mrb[0].mxu0
      %v961 = vadd.f32 %v842, %v960
      %v962 = vpop.f32.mrb[0].mxu0
      %963 = vmatprep.mubr.f32.mxu0 0.0
      %964 = vmatmul.mubr.f32.gmra.mrb[0].mxu0 %v816
      %v965 = vpop.f32.mrb[0].mxu0
      %v966 = vadd.f32 %v842, %v965
      %v967 = vpop.f32.mrb[0].mxu0
      %968 = vmatprep.mubr.f32.mxu0 0.0
      %969 = vmatmul.mubr.f32.gmra.mrb[0].mxu0 %v817
      %v970 = vpop.f32.mrb[0].mxu0
      %v971 = vadd.f32 %v842, %v970
      %v972 = vpop.f32.mrb[0].mxu0
      %973 = vmatprep.mubr.f32.mxu0 0.0
      %974 = vmatmul.mubr.f32.gmra.mrb[0].mxu0 %v818
      %v975 = vpop.f32.mrb[0].mxu0
      %v976 = vadd.f32 %v842, %v975
      %v977 = vpop.f32.mrb[0].mxu0
      %978 = vmatprep.mubr.f32.mxu0 0.0
      %979 = vmatmul.mubr.f32.gmra.mrb[0].mxu0 %v819
      %v980 = vpop.f32.mrb[0].mxu0
      %v981 = vadd.f32 %v842, %v980
      %v982 = vpop.f32.mrb[0].mxu0
      %983 = vmatprep.mubr.f32.mxu0 0.0
      %984 = vmatmul.mubr.f32.gmra.mrb[0].mxu0 %v820
      %v985 = vpop.f32.mrb[0].mxu0
      %v986 = vadd.f32 %v842, %v985
      %v987 = vpop.f32.mrb[0].mxu0
      %988 = vdwg.mxu0
      %v989 = vmax.f32 %v911, 0.0
      %v990 = vmax.f32 %v916, 0.0
      %v991 = vmax.f32 %v921, 0.0
      %v992 = vmax.f32 %v926, 0.0
      %v993 = vmax.f32 %v931, 0.0
      %v994 = vmax.f32 %v936, 0.0
      %v995 = vmax.f32 %v941, 0.0
      %v996 = vmax.f32 %v946, 0.0
      %v997 = vmax.f32 %v951, 0.0
      %v998 = vmax.f32 %v956, 0.0
      %v999 = vmax.f32 %v961, 0.0
      %v1000 = vmax.f32 %v966, 0.0
      %v1001 = vmax.f32 %v971, 0.0
      %v1002 = vmax.f32 %v976, 0.0
      %v1003 = vmax.f32 %v981, 0.0
      %v1004 = vmax.f32 %v986, 0.0
      %v1005 = vld [vmem:[%s7] sm:$0x1]
      %v1007 = vlaneseq
      %v1008 = vshrl.u32 %v1007, 7
      %v1009 = vsub.s32 0, %v1008
      %v1010 = vrot.slane %v1005, %v1009
      %v1012 = vmul.f32 %v989, %v1010
      %v1013 = vmul.f32 %v990, %v1010
      %v1014 = vmul.f32 %v991, %v1010
      %v1015 = vmul.f32 %v992, %v1010
      %v1016 = vmul.f32 %v993, %v1010
      %v1017 = vmul.f32 %v994, %v1010
      %v1018 = vmul.f32 %v995, %v1010
      %v1019 = vmul.f32 %v996, %v1010
      %v1020 = vmul.f32 %v997, %v1010
      %v1021 = vmul.f32 %v998, %v1010
      %v1022 = vmul.f32 %v999, %v1010
      %v1023 = vmul.f32 %v1000, %v1010
      %v1024 = vmul.f32 %v1001, %v1010
      %v1025 = vmul.f32 %v1002, %v1010
      %v1026 = vmul.f32 %v1003, %v1010
      %v1027 = vmul.f32 %v1004, %v1010
      %1028 = vadd.xlane.f32.xlu0 %v1012
      %v1029 = vpop.xlane.xlu0 %1028
      %1030 = vadd.xlane.f32.xlu0 %v1013
      %v1031 = vpop.xlane.xlu0 %1030
      %1032 = vadd.xlane.f32.xlu0 %v1014
      %v1033 = vpop.xlane.xlu0 %1032
      %1034 = vadd.xlane.f32.xlu0 %v1015
      %v1035 = vpop.xlane.xlu0 %1034
      %1036 = vadd.xlane.f32.xlu0 %v1016
      %v1037 = vpop.xlane.xlu0 %1036
      %1038 = vadd.xlane.f32.xlu0 %v1017
      %v1039 = vpop.xlane.xlu0 %1038
      %1040 = vadd.xlane.f32.xlu0 %v1018
      %v1041 = vpop.xlane.xlu0 %1040
      %1042 = vadd.xlane.f32.xlu0 %v1019
      %v1043 = vpop.xlane.xlu0 %1042
      %1044 = vadd.xlane.f32.xlu0 %v1020
      %v1045 = vpop.xlane.xlu0 %1044
      %1046 = vadd.xlane.f32.xlu0 %v1021
      %v1047 = vpop.xlane.xlu0 %1046
      %1048 = vadd.xlane.f32.xlu0 %v1022
      %v1049 = vpop.xlane.xlu0 %1048
      %1050 = vadd.xlane.f32.xlu0 %v1023
      %v1051 = vpop.xlane.xlu0 %1050
      %1052 = vadd.xlane.f32.xlu0 %v1024
      %v1053 = vpop.xlane.xlu0 %1052
      %1054 = vadd.xlane.f32.xlu0 %v1025
      %v1055 = vpop.xlane.xlu0 %1054
      %1056 = vadd.xlane.f32.xlu0 %v1026
      %v1057 = vpop.xlane.xlu0 %1056
      %1058 = vadd.xlane.f32.xlu0 %v1027
      %v1059 = vpop.xlane.xlu0 %1058
      %s1060 = sld [smem:[#allocation2]]
      %v1061 = vstv %s1060
      %v1062 = vadd.f32 %v1029, %v1061
      %v1063 = vadd.f32 %v1031, %v1061
      %v1064 = vadd.f32 %v1033, %v1061
      %v1065 = vadd.f32 %v1035, %v1061
      %v1066 = vadd.f32 %v1037, %v1061
      %v1067 = vadd.f32 %v1039, %v1061
      %v1068 = vadd.f32 %v1041, %v1061
      %v1069 = vadd.f32 %v1043, %v1061
      %v1070 = vadd.f32 %v1045, %v1061
      %v1071 = vadd.f32 %v1047, %v1061
      %v1072 = vadd.f32 %v1049, %v1061
      %v1073 = vadd.f32 %v1051, %v1061
      %v1074 = vadd.f32 %v1053, %v1061
      %v1075 = vadd.f32 %v1055, %v1061
      %v1076 = vadd.f32 %v1057, %v1061
      %v1077 = vadd.f32 %v1059, %v1061
      %vm1078 = vcmask 7168
      %1079 = vst.msk [vmem:[%s357] sm:$0xff] %vm1078, %v1062
      %1080 = vst.msk [vmem:[%s357 + $0x8] sm:$0xff] %vm1078, %v1063
      %1081 = vst.msk [vmem:[%s357 + $0x10] sm:$0xff] %vm1078, %v1064
      %1082 = vst.msk [vmem:[%s357 + $0x18] sm:$0xff] %vm1078, %v1065
      %1083 = vst.msk [vmem:[%s357 + $0x20] sm:$0xff] %vm1078, %v1066
      %1084 = vst.msk [vmem:[%s357 + $0x28] sm:$0xff] %vm1078, %v1067
      %1085 = vst.msk [vmem:[%s357 + $0x30] sm:$0xff] %vm1078, %v1068
      %1086 = vst.msk [vmem:[%s357 + $0x38] sm:$0xff] %vm1078, %v1069
      %1087 = vst.msk [vmem:[%s357 + $0x40] sm:$0xff] %vm1078, %v1070
      %1088 = vst.msk [vmem:[%s357 + $0x48] sm:$0xff] %vm1078, %v1071
      %1089 = vst.msk [vmem:[%s357 + $0x50] sm:$0xff] %vm1078, %v1072
      %1090 = vst.msk [vmem:[%s357 + $0x58] sm:$0xff] %vm1078, %v1073
      %1091 = vst.msk [vmem:[%s357 + $0x60] sm:$0xff] %vm1078, %v1074
      %1092 = vst.msk [vmem:[%s357 + $0x68] sm:$0xff] %vm1078, %v1075
      %1093 = vst.msk [vmem:[%s357 + $0x70] sm:$0xff] %vm1078, %v1076
      %1094 = vst.msk [vmem:[%s357 + $0x78] sm:$0xff] %vm1078, %v1077
      %s1095 = smul.u32 16, %s21
      %p1096 = scmp.lt.s32.totalorder %s1095, 31
      %s1097 = scalar_select %p1096, %s1095, 31
      %s1098 = smul.addr %s1097, 8
      %s1099 = scalar_lea.vmem %s9, %s1098
      // Predicated region
      $region57: #{critic_forward.1} parent=55 // pred_check
        %p1100 = pneg %p238
      $region58: #{critic_forward.1} parent=55 // pred_check_branch
        %1102 = sbr.rel (%p1100) target = $region60
      $region59: #{critic_forward.1} parent=55 // pred_region
        %s1103 = smul.u32 16, %s21
      $region60: #{critic_forward.1} parent=55 // pred_fallthru
        _
    $region56: #{critic_forward.1} parent=5 // pred_fallthru
      _
    %p1104 = scmp.le.s32.totalorder 2, %s16
    // Predicated region
    $region61: #{critic_forward.1} parent=5 // pred_check
      %p1105 = pneg %p1104
    $region62: #{critic_forward.1} parent=5 // pred_check_branch
      %1107 = sbr.rel (%p1105) target = $region64
    $region63: #{critic_forward.1} parent=5 // pred_region
      %s1108 = ssub.s32 %s16, 2
      // Predicated region
      $region65: #{critic_forward.1} parent=63 // pred_check
        %p1109 = pneg %p244
      $region66: #{critic_forward.1} parent=63 // pred_check_branch
        %1111 = sbr.rel (%p1109) target = $region68
      $region67: #{critic_forward.1} parent=63 // pred_region
        %s1112 = smul.u32 16, %s22
        %p1113 = scmp.lt.s32.totalorder %s1112, 31
        %s1114 = scalar_select %p1113, %s1112, 31
        %s1115 = smul.addr %s1114, 8
        %s1116 = scalar_lea.vmem %s9, %s1115
      $region68: #{critic_forward.1} parent=63 // pred_fallthru
        _
    $region64: #{critic_forward.1} parent=5 // pred_fallthru
      _
  $region6: #{critic_forward.1} parent=0 // loop_footer
    %s20 = sadd.s32 1, %s16
  $region7: #{critic_forward.1} parent=0 // loop_footer_branch
    %15 = sbr.rel target = $region3
  $region8: #{critic_forward.1} parent=0 // loop_exit
    _

</llo_original>
